<compile_context>
chip_gen: v7x
topology: tpu7x:2x2x1
jax: 0.10.0
libtpu: 0.0.40
codegen_flags: <defaults>
</compile_context>

<pallas_src>
import functools

import jax
import jax.numpy as jnp
from jax.experimental import pallas as pl
from jax.experimental.pallas import tpu as pltpu

_LANE = 128


def _round_up(x, m):
    return ((x + m - 1) // m) * m


def _vmem_capacity_bytes():
    try:
        return int(pltpu.get_tpu_info().vmem_capacity_bytes)
    except Exception:
        return 64 * 2 ** 20


def _fold_bn(p, eps):
    scale = (p["gamma"] / jnp.sqrt(p["var"] + eps)).astype(jnp.float32)
    shift = (p["beta"] - p["mean"] * scale).astype(jnp.float32)
    return scale, shift


# ----------------------- 3x3 atrous conv + BN + ReLU (Pallas) -----------------------

def _atrous3x3_kernel(xpad_hbm, w_ref, scale_ref, shift_ref, o_ref,
                      xbuf, acc_ref, sem,
                      *, TH, TH_in, Wo, Wc, row_off, col_off, KH, KW,
                      dilation, Cin, CK, Cout_p, nRT):
    """One (batch, row-tile) grid step of 3x3 atrous conv (stride 1) + folded BN + ReLU.

    xpad_hbm : (B, H+2*maxpad, W+2*maxpad, Cin) bf16 shared padded input, in HBM (pl.ANY)
    w_ref    : (9, Cin, Cout_p) bf16 resident taps
    scale/shift: (1, Cout_p) f32 folded BN params (zero in padded lanes)
    o_ref    : (1, TH*Wo, Cout_p) bf16 output tile (flattened spatial, lane-dense)
    xbuf     : VMEM (2, TH_in, Wc, Cin) bf16 double-buffered halo scratch
    acc_ref  : VMEM (TH*Wo, Cout_p) f32 accumulator
    sem      : DMA semaphores, shape (2,)
    """
    b = pl.program_id(0)
    r = pl.program_id(1)
    slot = r % 2

    def _start(row_tile, s):
        pltpu.make_async_copy(
            xpad_hbm.at[b, pl.ds(row_tile * TH + row_off, TH_in),
                        pl.ds(col_off, Wc), :],
            xbuf.at[s], sem.at[s]).start()

    # Prime the pipeline at the first row tile of each batch element.
    @pl.when(r == 0)
    def _():
        _start(0, 0)

    # Prefetch the next row tile into the other slot before computing this one.
    if nRT > 1:
        @pl.when(r + 1 < nRT)
        def _():
            _start(r + 1, 1 - slot)

    # Wait for the current tile's halo copy.
    pltpu.make_async_copy(
        xpad_hbm.at[b, pl.ds(row_off, TH_in), pl.ds(col_off, Wc), :],
        xbuf.at[slot], sem.at[slot]).wait()

    # Dilated conv = sum over 9 taps (x Cin chunks) of shifted-window matmuls on the
    # MXU, accumulated into a f32 VMEM scratch.  First contribution writes with `=`
    # (no explicit accumulator zero / extra VMEM store).
    # TODO(synk): on v7x, accumulate the taps in the MXU result buffer
    # (matmul_push_rhs / matmul_acc_lhs) instead of VMEM read-modify-write.
    first = True
    for c0 in range(0, Cin, CK):
        cw = min(CK, Cin - c0)
        for kh in range(KH):
            for kw in range(KW):
                patch = xbuf[slot,
                             pl.ds(kh * dilation, TH),
                             pl.ds(kw * dilation, Wo),
                             pl.ds(c0, cw)]                     # (TH, Wo, cw) bf16
                contrib = jnp.dot(patch.reshape(TH * Wo, cw),
                                  w_ref[kh * KW + kw, pl.ds(c0, cw), :],
                                  preferred_element_type=jnp.float32)
                if first:
                    acc_ref[...] = contrib
                    first = False
                else:
                    acc_ref[...] += contrib

    # Fused eval-mode BatchNorm (folded scale/shift) + ReLU epilogue in f32,
    # stored lane-dense as bf16 (no in-kernel spatial reshape).
    y = acc_ref[...] * scale_ref[...] + shift_ref[...]
    o_ref[0] = jnp.maximum(y, 0.0).astype(o_ref.dtype)


def _pick_row_tile(Ho, Wo, halo, Wc, Cin, Cout_p, CK, budget):
    """Largest row tile TH (divisor of Ho, layout-legal flattened M) whose per-step
    VMEM footprint fits `budget`.  Bigger TH amortizes the dilation halo traffic."""
    cin_pad = _round_up(Cin, _LANE)
    ck_pad = min(cin_pad, _round_up(CK, _LANE))
    valid = [d for d in range(1, Ho + 1)
             if Ho % d == 0 and ((d * Wo) % 8 == 0 or d == Ho)]
    fitting = []
    for th in valid:
        m = th * Wo
        est = (2 * (th + halo) * _round_up(Wc, 16) * cin_pad * 2  # dbl-buffered halo scratch
               + m * Cout_p * 4                                   # f32 accumulator
               + 2 * m * Cout_p * 2                               # dbl-buffered bf16 out block
               + 2 * m * ck_pad * 2                               # im2col temps
               + 9 * cin_pad * Cout_p * 2)                        # resident taps
        if est <= budget and m <= 8192:
            fitting.append(th)
    return max(fitting) if fitting else min(valid)


def _atrous3x3_bn_relu(xpad, w_taps, scale, shift, *, H, W, dilation, maxpad, vmem_cap):
    """3x3 atrous conv (stride 1, padding == dilation) + folded BN + ReLU.

    Returns (B, H*W, Cout_p) bf16 (flattened spatial, lane-padded channels)."""
    B = xpad.shape[0]
    Cin = xpad.shape[-1]
    KH = KW = 3
    Cout_p = w_taps.shape[-1]
    Ho, Wo = H, W
    halo = (KH - 1) * dilation
    Wc = W + 2 * dilation                 # columns needed from the shared padded input
    row_off = col_off = maxpad - dilation
    CK = Cin if Cin <= 512 else 512

    budget = (vmem_cap * 2) // 5
    TH = _pick_row_tile(Ho, Wo, halo, Wc, Cin, Cout_p, CK, budget)
    nRT = Ho // TH
    TH_in = TH + halo
    M = TH * Wo

    cin_pad = _round_up(Cin, _LANE)
    est = (2 * TH_in * _round_up(Wc, 16) * cin_pad * 2
           + M * Cout_p * 4
           + 2 * M * Cout_p * 2
           + 2 * M * min(cin_pad, _round_up(CK, _LANE)) * 2
           + KH * KW * cin_pad * Cout_p * 2
           + 4 * Cout_p * 4)
    vmem_limit = int(min(vmem_cap * 9 // 10, max(32 * 2 ** 20, 3 * est)))

    kernel = functools.partial(
        _atrous3x3_kernel, TH=TH, TH_in=TH_in, Wo=Wo, Wc=Wc,
        row_off=row_off, col_off=col_off, KH=KH, KW=KW,
        dilation=dilation, Cin=Cin, CK=CK, Cout_p=Cout_p, nRT=nRT)

    return pl.pallas_call(
        kernel,
        out_shape=jax.ShapeDtypeStruct((B, Ho * Wo, Cout_p), jnp.bfloat16),
        grid_spec=pltpu.PrefetchScalarGridSpec(
            num_scalar_prefetch=0,
            grid=(B, nRT),
            in_specs=[
                pl.BlockSpec(memory_space=pl.ANY),              # padded input stays in HBM
                pl.BlockSpec((KH * KW, Cin, Cout_p), lambda b, r: (0, 0, 0)),
                pl.BlockSpec((1, Cout_p), lambda b, r: (0, 0)),
                pl.BlockSpec((1, Cout_p), lambda b, r: (0, 0)),
            ],
            out_specs=pl.BlockSpec((1, M, Cout_p), lambda b, r: (b, r, 0)),
            scratch_shapes=[
                pltpu.VMEM((2, TH_in, Wc, Cin), jnp.bfloat16),  # double-buffered halo tile
                pltpu.VMEM((M, Cout_p), jnp.float32),           # f32 accumulator
                pltpu.SemaphoreType.DMA((2,)),
            ],
        ),
        compiler_params=pltpu.CompilerParams(
            dimension_semantics=("parallel", "arbitrary"),      # row axis sequential for prefetch
            vmem_limit_bytes=vmem_limit),
    )(xpad, w_taps, scale, shift)


# ----------------------- 1x1 conv + BN + ReLU fast path (Pallas) ---------------------

def _conv1x1_kernel(x_ref, w_ref, scale_ref, shift_ref, o_ref, acc_ref, *, Cin, CK):
    first = True
    for c0 in range(0, Cin, CK):
        cw = min(CK, Cin - c0)
        contrib = jnp.dot(x_ref[0, :, pl.ds(c0, cw)],
                          w_ref[pl.ds(c0, cw), :],
                          preferred_element_type=jnp.float32)
        if first:
            acc_ref[...] = contrib
            first = False
        else:
            acc_ref[...] += contrib
    y = acc_ref[...] * scale_ref[0] + shift_ref[0]
    o_ref[0] = jnp.maximum(y, 0.0).astype(o_ref.dtype)


def _pick_m_tile(M, Cin, Cout_p, budget):
    cin_pad = _round_up(Cin, _LANE)
    valid = [d for d in range(1, M + 1) if M % d == 0 and (d % 8 == 0 or d == M)]
    fitting = [tm for tm in valid
               if (2 * tm * cin_pad * 2 + tm * Cout_p * 4 + 2 * tm * Cout_p * 4
                   + cin_pad * Cout_p * 2) <= budget and tm <= 8192]
    return max(fitting) if fitting else min(valid)


def _conv1x1_bn_relu(x_flat, w_mat, scale, shift, *, out_dtype, vmem_cap):
    """1x1 conv (as matmul) + folded BN + ReLU on a flattened (B, M, Cin) input.

    scale: (1, 1, Cout_p).  shift: (Bs, 1, Cout_p) with Bs in {1, B}; a per-batch shift
    is used to fold the spatially-constant global-avg-pool branch into the projection."""
    B, M, Cin = x_flat.shape
    Cin_w, Cout_p = w_mat.shape
    assert Cin == Cin_w
    CK = Cin if Cin <= 512 else 512
    budget = (vmem_cap * 2) // 5
    TM = _pick_m_tile(M, Cin, Cout_p, budget)
    nMT = M // TM

    cin_pad = _round_up(Cin, _LANE)
    est = (2 * TM * cin_pad * 2 + TM * Cout_p * 4 + 2 * TM * Cout_p * 4
           + cin_pad * Cout_p * 2 + 8 * Cout_p * 4)
    vmem_limit = int(min(vmem_cap * 9 // 10, max(32 * 2 ** 20, 3 * est)))

    Bs = shift.shape[0]
    shift_map = (lambda b, m: (0, 0, 0)) if Bs == 1 else (lambda b, m: (b, 0, 0))

    kernel = functools.partial(_conv1x1_kernel, Cin=Cin, CK=CK)

    return pl.pallas_call(
        kernel,
        out_shape=jax.ShapeDtypeStruct((B, M, Cout_p), out_dtype),
        grid_spec=pltpu.PrefetchScalarGridSpec(
            num_scalar_prefetch=0,
            grid=(B, nMT),
            in_specs=[
                pl.BlockSpec((1, TM, Cin), lambda b, m: (b, m, 0)),
                pl.BlockSpec((Cin, Cout_p), lambda b, m: (0, 0)),
                pl.BlockSpec((1, 1, Cout_p), lambda b, m: (0, 0, 0)),
                pl.BlockSpec((1, 1, Cout_p), shift_map),
            ],
            out_specs=pl.BlockSpec((1, TM, Cout_p), lambda b, m: (b, m, 0)),
            scratch_shapes=[pltpu.VMEM((TM, Cout_p), jnp.float32)],
        ),
        compiler_params=pltpu.CompilerParams(
            dimension_semantics=("parallel", "parallel"),
            vmem_limit_bytes=vmem_limit),
    )(x_flat, w_mat, scale, shift)


# ------------------------------------ ASPP forward -----------------------------------

def aspp_forward(x_nchw, params, *, output_stride=16, eps=1e-5):
    """Full ASPP forward (eval mode): 4 atrous branches + global-avg-pool branch,
    concat, 1x1 projection conv + BN + ReLU.  NCHW in / NCHW out."""
    if output_stride == 16:
        dilations = (1, 6, 12, 18)
    elif output_stride == 8:
        dilations = (1, 12, 24, 36)
    else:
        raise NotImplementedError(output_stride)

    # TODO(synk): in a full NHWC model these boundary transposes should be removed.
    x = jnp.transpose(x_nchw, (0, 2, 3, 1)).astype(jnp.float32)     # NHWC f32
    B, H, W, Cin = x.shape
    planes = params["aspp1"]["w"].shape[0]
    Cout_p = _round_up(planes, _LANE)
    vmem_cap = _vmem_capacity_bytes()

    # Cast to bf16 ONCE (shared by all branches); a single max-dilation padded copy
    # feeds all three atrous branches (each offsets into it).
    xb = x.astype(jnp.bfloat16)
    xb_flat = xb.reshape(B, H * W, Cin)
    maxpad = dilations[3]
    xpad = jnp.pad(xb, ((0, 0), (maxpad, maxpad), (maxpad, maxpad), (0, 0)))
    # TODO(synk): fold the zero padding into the kernels' halo DMA (clamped copy +
    # in-kernel edge zero fill) to remove this padded HBM copy entirely.

    def pad_vec(v, n):
        return jnp.pad(v, (0, n - v.shape[0]))

    # --- aspp1: 1x1 conv branch (fast path: no halo machinery) ---
    p1 = params["aspp1"]
    w1 = jnp.pad(p1["w"].reshape(planes, Cin).T, ((0, 0), (0, Cout_p - planes)))
    s1, sh1 = _fold_bn(p1, eps)
    x1 = _conv1x1_bn_relu(
        xb_flat, w1.astype(jnp.bfloat16),
        pad_vec(s1, Cout_p).reshape(1, 1, Cout_p),
        pad_vec(sh1, Cout_p).reshape(1, 1, Cout_p),
        out_dtype=jnp.bfloat16, vmem_cap=vmem_cap)

    # --- aspp2/3/4: 3x3 atrous branches ---
    def atrous(name, d):
        p = params[name]
        w = jnp.transpose(p["w"], (2, 3, 1, 0)).reshape(9, Cin, planes)
        w = jnp.pad(w, ((0, 0), (0, 0), (0, Cout_p - planes))).astype(jnp.bfloat16)
        s, sh = _fold_bn(p, eps)
        return _atrous3x3_bn_relu(
            xpad, w,
            pad_vec(s, Cout_p).reshape(1, Cout_p),
            pad_vec(sh, Cout_p).reshape(1, Cout_p),
            H=H, W=W, dilation=d, maxpad=maxpad, vmem_cap=vmem_cap)

    x2 = atrous("aspp2", dilations[1])
    x3 = atrous("aspp3", dilations[2])
    x4 = atrous("aspp4", dilations[3])

    # --- global-avg-pool branch: plain JAX (an M=1 Pallas grid step is pure per-step
    # overhead).  Bilinear upsampling of a 1x1 map with align_corners=True is an exact
    # broadcast, so the branch is spatially constant per batch element and is folded
    # into the projection's per-batch BN shift below (no broadcast ever hits HBM). ---
    pg = params["gap"]
    pooled = jnp.mean(x, axis=(1, 2))                                # (B, Cin) f32
    wg = pg["w"].reshape(planes, Cin)
    zg = jnp.dot(pooled.astype(jnp.bfloat16).astype(jnp.float32),
                 wg.astype(jnp.bfloat16).astype(jnp.float32).T)      # (B, planes)
    sg, shg = _fold_bn(pg, eps)
    x5 = jnp.maximum(zg * sg + shg, 0.0)                             # (B, planes)

    # --- concat (4 lane-padded bf16 branches) -> 1x1 projection conv + BN + ReLU ---
    cat = jnp.concatenate([x1, x2, x3, x4], axis=-1)                 # (B, H*W, 4*Cout_p)
    # TODO(synk): have each branch write its channel stripe of `cat` directly
    # (input_output_aliases + channel-offset out BlockSpec) to drop this concat copy.
    pp = params["proj"]
    Cproj = pp["w"].shape[0]
    Cproj_p = _round_up(Cproj, _LANE)
    pw = pp["w"].reshape(Cproj, 5 * planes).astype(jnp.float32)
    wcat = jnp.zeros((4 * Cout_p, Cproj_p), jnp.float32)
    for k in range(4):
        wcat = wcat.at[k * Cout_p:k * Cout_p + planes, :Cproj].set(
            pw[:, k * planes:(k + 1) * planes].T)
    w5 = pw[:, 4 * planes:5 * planes]                                # (Cproj, planes)
    sp, shp = _fold_bn(pp, eps)
    gap_term = jnp.dot(x5.astype(jnp.bfloat16).astype(jnp.float32),
                       w5.astype(jnp.bfloat16).astype(jnp.float32).T)  # (B, Cproj)
    shift_b = shp[None, :] + sp[None, :] * gap_term                  # per-batch shift
    y = _conv1x1_bn_relu(
        cat, wcat.astype(jnp.bfloat16),
        pad_vec(sp, Cproj_p).reshape(1, 1, Cproj_p),
        jnp.pad(shift_b, ((0, 0), (0, Cproj_p - Cproj))).reshape(B, 1, Cproj_p),
        out_dtype=jnp.float32, vmem_cap=vmem_cap)                    # (B, H*W, Cproj_p)

    # TODO(synk): nn.Dropout(0.5) is identity in eval mode; training-mode dropout and
    # training-mode BN statistic updates are not implemented.
    y = y[:, :, :Cproj].reshape(B, H, W, Cproj)
    return jnp.transpose(y, (0, 3, 1, 2))                            # NCHW


# ------------------------- pure-JAX reference (validation) -------------------------

def _ref_conv_bn_relu(x_nhwc, w, gamma, beta, mean, var, *, padding, dilation, eps=1e-5):
    # Mirror the kernel's quantization: bf16-rounded operands, f32 accumulation.
    xb = x_nhwc.astype(jnp.bfloat16).astype(jnp.float32)
    wb = w.astype(jnp.bfloat16).astype(jnp.float32)
    y = jax.lax.conv_general_dilated(
        xb, wb, window_strides=(1, 1),
        padding=((padding, padding), (padding, padding)),
        rhs_dilation=(dilation, dilation),
        dimension_numbers=("NHWC", "OIHW", "NHWC"))
    scale = gamma / jnp.sqrt(var + eps)
    shift = beta - mean * scale
    return jnp.maximum(y * scale + shift, 0.0)


def aspp_reference(x_nchw, params, *, output_stride=16, eps=1e-5):
    dilations = (1, 6, 12, 18) if output_stride == 16 else (1, 12, 24, 36)
    x = jnp.transpose(x_nchw, (0, 2, 3, 1)).astype(jnp.float32)

    def branch(name, inp, padding, dilation):
        p = params[name]
        return _ref_conv_bn_relu(inp, p["w"], p["gamma"], p["beta"], p["mean"],
                                 p["var"], padding=padding, dilation=dilation, eps=eps)

    x1 = branch("aspp1", x, 0, dilations[0])
    x2 = branch("aspp2", x, dilations[1], dilations[1])
    x3 = branch("aspp3", x, dilations[2], dilations[2])
    x4 = branch("aspp4", x, dilations[3], dilations[3])
    pooled = jnp.mean(x, axis=(1, 2), keepdims=True)
    x5 = branch("gap", pooled, 0, 1)
    B, Ho, Wo, _ = x4.shape
    x5 = jnp.broadcast_to(x5, (B, Ho, Wo, x5.shape[-1]))
    cat = jnp.concatenate([x1, x2, x3, x4, x5], axis=-1)
    y = branch("proj", cat, 0, 1)
    return jnp.transpose(y, (0, 3, 1, 2))


if __name__ == "__main__":
    # Small deterministic stand-in for ASPP(output_stride=16):
    # inplanes -> 4, planes -> 8, dilations (1, 6, 12, 18), 16x16 feature map.
    B, Cin, H, W = 2, 4, 16, 16
    planes = 8
    output_stride = 16

    root = jax.random.PRNGKey(0)
    keys = jax.random.split(root, 13)

    def conv_init(k, cout, cin, kh, kw):
        fan_in = cin * kh * kw
        return (jax.random.normal(k, (cout, cin, kh, kw), jnp.float32)
                * jnp.sqrt(2.0 / fan_in))

    def bn_init(k, c):
        km, kv = jax.random.split(k)
        return dict(
            gamma=jnp.ones((c,), jnp.float32),
            beta=jnp.zeros((c,), jnp.float32),
            mean=0.1 * jax.random.normal(km, (c,), jnp.float32),
            var=1.0 + 0.1 * jnp.abs(jax.random.normal(kv, (c,), jnp.float32)))

    params = {
        "aspp1": dict(w=conv_init(keys[0], planes, Cin, 1, 1), **bn_init(keys[1], planes)),
        "aspp2": dict(w=conv_init(keys[2], planes, Cin, 3, 3), **bn_init(keys[3], planes)),
        "aspp3": dict(w=conv_init(keys[4], planes, Cin, 3, 3), **bn_init(keys[5], planes)),
        "aspp4": dict(w=conv_init(keys[6], planes, Cin, 3, 3), **bn_init(keys[7], planes)),
        "gap":   dict(w=conv_init(keys[8], planes, Cin, 1, 1), **bn_init(keys[9], planes)),
        "proj":  dict(w=conv_init(keys[10], planes, 5 * planes, 1, 1),
                      **bn_init(keys[11], planes)),
    }
    x = jax.random.normal(keys[12], (B, Cin, H, W), jnp.float32)

    out = aspp_forward(x, params, output_stride=output_stride)
    out = jax.block_until_ready(out)

    ref = aspp_reference(x, params, output_stride=output_stride)
    assert out.shape == (B, planes, H, W), out.shape
    max_err = float(jnp.max(jnp.abs(out - ref)))
    assert jnp.allclose(out, ref, atol=1e-2, rtol=1e-2), f"mismatch vs reference: {max_err}"

    print("KERNEL_OK")
</pallas_src>

<mosaic_0001>
module attributes {stable_mosaic.version = 11 : i64} {
  func.func @_conv1x1_kernel(%arg0: i32, %arg1: i32, %arg2: memref<1x256x4xbf16, #tpu.memory_space<vmem>>, %arg3: memref<4x128xbf16, #tpu.memory_space<vmem>>, %arg4: memref<1x1x128xf32, #tpu.memory_space<vmem>>, %arg5: memref<1x1x128xf32, #tpu.memory_space<vmem>>, %arg6: memref<1x256x128xbf16, #tpu.memory_space<vmem>>, %arg7: memref<256x128xf32, #tpu.memory_space<vmem>>) attributes {dimension_semantics = [#tpu.dimension_semantics<parallel>, #tpu.dimension_semantics<parallel>], iteration_bounds = array<i64: 2, 1>, scalar_prefetch = 0 : i64, scratch_operands = 1 : i64, tpu.core_type = #tpu.core_type<tc>, window_params = [{transform_indices = @transform_0, window_bounds = array<i64: 1, 256, 4>}, {pipeline_mode = #tpu.pipeline_mode<synchronous>, transform_indices = @transform_1, window_bounds = array<i64: 4, 128>}, {pipeline_mode = #tpu.pipeline_mode<synchronous>, transform_indices = @transform_2, window_bounds = array<i64: 1, 1, 128>}, {pipeline_mode = #tpu.pipeline_mode<synchronous>, transform_indices = @transform_3, window_bounds = array<i64: 1, 1, 128>}, {transform_indices = @transform_4, window_bounds = array<i64: 1, 256, 128>}]} {
    %c0 = arith.constant 0 : index
    %c0_0 = arith.constant 0 : index
    %c0_1 = arith.constant 0 : index
    %0 = vector.load %arg2[%c0, %c0_0, %c0_1] : memref<1x256x4xbf16, #tpu.memory_space<vmem>>, vector<1x256x4xbf16>
    %1 = vector.shape_cast %0 : vector<1x256x4xbf16> to vector<256x4xbf16>
    %c0_2 = arith.constant 0 : index
    %c0_3 = arith.constant 0 : index
    %2 = vector.load %arg3[%c0_2, %c0_3] : memref<4x128xbf16, #tpu.memory_space<vmem>>, vector<4x128xbf16>
    %cst = arith.constant dense<0.000000e+00> : vector<256x128xf32>
    %3 = tpu.matmul %1, %2, %cst {dimension_numbers = #tpu.dot_dimension_numbers<[1], [0], [0], [1], [0, 0, 1, 1], [], []>} : vector<256x4xbf16>, vector<4x128xbf16>, vector<256x128xf32> -> vector<256x128xf32>
    %c0_4 = arith.constant 0 : index
    %c0_5 = arith.constant 0 : index
    %4 = vector.load %arg7[%c0_4, %c0_5] : memref<256x128xf32, #tpu.memory_space<vmem>>, vector<256x128xf32>
    tpu.vector_store %arg7[%c0_4, %c0_5], %3 {strides = array<i32>} : memref<256x128xf32, #tpu.memory_space<vmem>>, vector<256x128xf32>,
    %c0_6 = arith.constant 0 : index
    %c0_7 = arith.constant 0 : index
    %5 = vector.load %arg7[%c0_6, %c0_7] : memref<256x128xf32, #tpu.memory_space<vmem>>, vector<256x128xf32>
    %c0_8 = arith.constant 0 : index
    %c0_9 = arith.constant 0 : index
    %c0_10 = arith.constant 0 : index
    %6 = vector.load %arg4[%c0_8, %c0_9, %c0_10] : memref<1x1x128xf32, #tpu.memory_space<vmem>>, vector<1x1x128xf32>
    %7 = vector.shape_cast %6 : vector<1x1x128xf32> to vector<1x128xf32>
    %8 = vector.broadcast %7 : vector<1x128xf32> to vector<256x128xf32>
    %9 = arith.mulf %5, %8 : vector<256x128xf32>
    %c0_11 = arith.constant 0 : index
    %c0_12 = arith.constant 0 : index
    %c0_13 = arith.constant 0 : index
    %10 = vector.load %arg5[%c0_11, %c0_12, %c0_13] : memref<1x1x128xf32, #tpu.memory_space<vmem>>, vector<1x1x128xf32>
    %11 = vector.shape_cast %10 : vector<1x1x128xf32> to vector<1x128xf32>
    %12 = vector.broadcast %11 : vector<1x128xf32> to vector<256x128xf32>
    %13 = arith.addf %9, %12 : vector<256x128xf32>
    %cst_14 = arith.constant 0.000000e+00 : f32
    %14 = vector.broadcast %cst_14 : f32 to vector<256x128xf32>
    %15 = arith.maximumf %13, %14 : vector<256x128xf32>
    %16 = arith.truncf %15 : vector<256x128xf32> to vector<256x128xbf16>
    %c0_15 = arith.constant 0 : index
    %c0_16 = arith.constant 0 : index
    %c0_17 = arith.constant 0 : index
    %17 = vector.load %arg6[%c0_15, %c0_16, %c0_17] : memref<1x256x128xbf16, #tpu.memory_space<vmem>>, vector<1x256x128xbf16>
    %18 = vector.shape_cast %17 : vector<1x256x128xbf16> to vector<256x128xbf16>
    %19 = vector.shape_cast %16 : vector<256x128xbf16> to vector<1x256x128xbf16>
    tpu.vector_store %arg6[%c0_15, %c0_16, %c0_17], %19 {strides = array<i32>} : memref<1x256x128xbf16, #tpu.memory_space<vmem>>, vector<1x256x128xbf16>,
    return
  }
  func.func @transform_0(%arg0: i32, %arg1: i32) -> (i32, i32, i32) {
    %c0_i32 = arith.constant 0 : i32
    %c0_i32_0 = arith.constant 0 : i32
    return %arg0, %arg1, %c0_i32 : i32, i32, i32
  }
  func.func @transform_1(%arg0: i32, %arg1: i32) -> (i32, i32) {
    %c0_i32 = arith.constant 0 : i32
    %c0_i32_0 = arith.constant 0 : i32
    %c0_i32_1 = arith.constant 0 : i32
    return %c0_i32, %c0_i32_0 : i32, i32
  }
  func.func @transform_2(%arg0: i32, %arg1: i32) -> (i32, i32, i32) {
    %c0_i32 = arith.constant 0 : i32
    %c0_i32_0 = arith.constant 0 : i32
    %c0_i32_1 = arith.constant 0 : i32
    %c0_i32_2 = arith.constant 0 : i32
    return %c0_i32, %c0_i32_0, %c0_i32_1 : i32, i32, i32
  }
  func.func @transform_3(%arg0: i32, %arg1: i32) -> (i32, i32, i32) {
    %c0_i32 = arith.constant 0 : i32
    %c0_i32_0 = arith.constant 0 : i32
    %c0_i32_1 = arith.constant 0 : i32
    %c0_i32_2 = arith.constant 0 : i32
    return %c0_i32, %c0_i32_0, %c0_i32_1 : i32, i32, i32
  }
  func.func @transform_4(%arg0: i32, %arg1: i32) -> (i32, i32, i32) {
    %c0_i32 = arith.constant 0 : i32
    %c0_i32_0 = arith.constant 0 : i32
    return %arg0, %arg1, %c0_i32 : i32, i32, i32
  }
}

</mosaic_0001>

<llo_original>
// kernel: tpu_custom_call.1
$region0: #{tpu_custom_call.1}
  #allocation0 [shape = 'u32[]', space=smem, size = 0x4, offset = 0x4, fixed_abs, tag = 'smem constant byte address 0x4 - core index']
  #allocation1 [shape = 'u32[144,128]{1,0:T(1,128)}', space=vmem, size = 0x12000, scoped, tag = 'internal scratch']
  #allocation2 [shape = 'f32[256,128]{1,0:T(8,128)}', space=vmem, size = 0x20000, scoped, tag = 'scratch operand']
  %s0 = inlined_call_operand.vmem [shape: bf16[2,256,4], index: 0, kind: input, shape index: {}]
  %s1 = inlined_call_operand.vmem [shape: bf16[4,128], index: 1, kind: input, shape index: {}]
  %s2 = inlined_call_operand.vmem [shape: f32[1,1,128], index: 2, kind: input, shape index: {}]
  %s3 = inlined_call_operand.vmem [shape: f32[1,1,128], index: 3, kind: input, shape index: {}]
  %s4 = inlined_call_operand.hbm [shape: bf16[2,256,128], index: 4, kind: output, shape index: {}]
  %s5 = sld [smem:[#allocation0]]
  $region49: #{tpu_custom_call.1} parent=0
    _
  %s7 = ssub.s32 1, %s5
  %s8 = scalar_select 0, %s7, %s5
  $region1: #{tpu_custom_call.1} parent=0
    #allocation3 [shape = 'u8[131072]{0}', space=vmem, size = 0x20000, scoped, tag = 'output window, operand 0']
    #allocation4 [shape = 's32[2]{0}', space=sflag, size = 0x8, scoped, tag = 'scoped memory for tpu_custom_call.1']
    %9 = vsyncpa [#allocation4], 0
    %s10 = scalar_lea.sflag [#allocation4], 1
    %11 = vsyncpa %s10, 0
    loop: start=0, step=1, limit=4
    $region2: #{tpu_custom_call.1} parent=1 // loop_pre_header
      _
    $region3: #{tpu_custom_call.1} parent=1 // loop_header
      %s13 = sphi 0, %s17
      %p14 = scmp.ge.s32.totalorder %s13, 4
      %s20 = sphi 0, %s32
      %s21 = sphi 0, %s28
      %s22 = sphi 0, %s20
      %s23 = sphi 0, %s21
      %s24 = sphi 0, %s22
      %s25 = sphi 0, %s23
      %s37 = sphi 0, %s39
      %s40 = sphi 0, %s37
      %s41 = sphi 0, %s40
      %s57 = sphi 0, %s41
      %s61 = sphi 0, %s61
      %s63 = sphi 0, %s61
      %s64 = sphi 0, %s63
      %s78 = sphi 0, %s64
      %s82 = sphi 0, %s82
      %s84 = sphi 0, %s82
      %s85 = sphi 0, %s84
      %s99 = sphi 0, %s85
      %s103 = sphi 0, %s103
      %s105 = sphi 0, %s103
      %s106 = sphi 0, %s105
      %s120 = sphi 0, %s106
      %s128 = sphi 0, %s130
      %s131 = sphi 0, %s128
      %s132 = sphi 0, %s131
      %s148 = sphi 0, %s132
    $region4: #{tpu_custom_call.1} parent=1 // loop_header_branch
      %16 = sbr.rel (%p14) target = $region8
    $region5: #{tpu_custom_call.1} parent=1 // loop_body
      %s18 = ssub.s32 %s13, 1
      %s19 = ssub.s32 %s13, 2
      %s26 = sadd.s32 1, %s21
      %p27 = scmp.ge.s32.totalorder %s26, 1
      %s28 = scalar_select %p27, 0, %s26
      %s29 = sadd.s32 1, %s20
      %s30 = scalar_select %p27, %s29, %s20
      %p31 = scmp.ge.s32.totalorder %s30, 2
      %s32 = scalar_select %p31, 0, %s30
      %s33 = ssub.s32 %s20, %s32
      %s34 = ssub.s32 %s21, %s28
      %s35 = sor.u32 %s33, %s34
      %p36 = scmp.eq.s32.totalorder %s35, 0
      %s38 = sadd.s32 %s37, 1
      %s39 = scalar_select %p36, %s37, %s38
      %p42 = pneg %p36
      %p43 = scmp.eq.s32.totalorder %s13, 1
      %p44 = por %p42, %p43
      %p45 = scmp.ne.s32.totalorder %s37, %s40
      %p46 = scmp.eq.s32.totalorder %s13, 0
      %p47 = por %p45, %p46
      %p48 = scmp.ne.s32.totalorder %s37, %s40
      %p49 = scmp.eq.s32.totalorder %s18, 1
      %p50 = por %p48, %p49
      %p51 = scmp.ne.s32.totalorder %s40, %s41
      %p52 = scmp.eq.s32.totalorder %s18, 0
      %p53 = por %p51, %p52
      %p54 = scmp.ne.s32.totalorder %s40, %s41
      %p55 = scmp.eq.s32.totalorder %s19, 1
      %p56 = por %p54, %p55
      %p58 = scmp.ne.s32.totalorder %s41, %s57
      %p59 = scmp.eq.s32.totalorder %s19, 0
      %p60 = por %p58, %p59
      %s62 = sadd.s32 %s61, 1
      %p65 = scmp.eq.s32.totalorder %s13, 1
      %p66 = scmp.ne.s32.totalorder %s61, %s63
      %p67 = scmp.eq.s32.totalorder %s13, 0
      %p68 = por %p66, %p67
      %p69 = scmp.ne.s32.totalorder %s61, %s63
      %p70 = scmp.eq.s32.totalorder %s18, 1
      %p71 = por %p69, %p70
      %p72 = scmp.ne.s32.totalorder %s63, %s64
      %p73 = scmp.eq.s32.totalorder %s18, 0
      %p74 = por %p72, %p73
      %p75 = scmp.ne.s32.totalorder %s63, %s64
      %p76 = scmp.eq.s32.totalorder %s19, 1
      %p77 = por %p75, %p76
      %p79 = scmp.ne.s32.totalorder %s64, %s78
      %p80 = scmp.eq.s32.totalorder %s19, 0
      %p81 = por %p79, %p80
      %s83 = sadd.s32 %s82, 1
      %p86 = scmp.eq.s32.totalorder %s13, 1
      %p87 = scmp.ne.s32.totalorder %s82, %s84
      %p88 = scmp.eq.s32.totalorder %s13, 0
      %p89 = por %p87, %p88
      %p90 = scmp.ne.s32.totalorder %s82, %s84
      %p91 = scmp.eq.s32.totalorder %s18, 1
      %p92 = por %p90, %p91
      %p93 = scmp.ne.s32.totalorder %s84, %s85
      %p94 = scmp.eq.s32.totalorder %s18, 0
      %p95 = por %p93, %p94
      %p96 = scmp.ne.s32.totalorder %s84, %s85
      %p97 = scmp.eq.s32.totalorder %s19, 1
      %p98 = por %p96, %p97
      %p100 = scmp.ne.s32.totalorder %s85, %s99
      %p101 = scmp.eq.s32.totalorder %s19, 0
      %p102 = por %p100, %p101
      %s104 = sadd.s32 %s103, 1
      %p107 = scmp.eq.s32.totalorder %s13, 1
      %p108 = scmp.ne.s32.totalorder %s103, %s105
      %p109 = scmp.eq.s32.totalorder %s13, 0
      %p110 = por %p108, %p109
      %p111 = scmp.ne.s32.totalorder %s103, %s105
      %p112 = scmp.eq.s32.totalorder %s18, 1
      %p113 = por %p111, %p112
      %p114 = scmp.ne.s32.totalorder %s105, %s106
      %p115 = scmp.eq.s32.totalorder %s18, 0
      %p116 = por %p114, %p115
      %p117 = scmp.ne.s32.totalorder %s105, %s106
      %p118 = scmp.eq.s32.totalorder %s19, 1
      %p119 = por %p117, %p118
      %p121 = scmp.ne.s32.totalorder %s106, %s120
      %p122 = scmp.eq.s32.totalorder %s19, 0
      %p123 = por %p121, %p122
      %s124 = ssub.s32 %s20, %s32
      %s125 = ssub.s32 %s21, %s28
      %s126 = sor.u32 %s124, %s125
      %p127 = scmp.eq.s32.totalorder %s126, 0
      %s129 = sadd.s32 %s128, 1
      %s130 = scalar_select %p127, %s128, %s129
      %p133 = pneg %p127
      %p134 = scmp.eq.s32.totalorder %s13, 1
      %p135 = por %p133, %p134
      %p136 = scmp.ne.s32.totalorder %s128, %s131
      %p137 = scmp.eq.s32.totalorder %s13, 0
      %p138 = por %p136, %p137
      %p139 = scmp.ne.s32.totalorder %s128, %s131
      %p140 = scmp.eq.s32.totalorder %s18, 1
      %p141 = por %p139, %p140
      %p142 = scmp.ne.s32.totalorder %s131, %s132
      %p143 = scmp.eq.s32.totalorder %s18, 0
      %p144 = por %p142, %p143
      %p145 = scmp.ne.s32.totalorder %s131, %s132
      %p146 = scmp.eq.s32.totalorder %s19, 1
      %p147 = por %p145, %p146
      %p149 = scmp.ne.s32.totalorder %s132, %s148
      %p150 = scmp.eq.s32.totalorder %s19, 0
      %p151 = por %p149, %p150
      %p152 = scmp.le.s32.totalorder 1, %s13
      %p153 = scmp.lt.s32.totalorder %s13, 3
      %p154 = pnand %p152, %p153
      %p155 = pneg %p154
      // Predicated region
      $region9: #{tpu_custom_call.1} parent=5 // pred_check
        _
      $region10: #{tpu_custom_call.1} parent=5 // pred_check_branch
        %157 = sbr.rel (%p154) target = $region12
      $region11: #{tpu_custom_call.1} parent=5 // pred_region
        %s158 = ssub.s32 %s13, 1
        // Predicated region
        $region13: #{tpu_custom_call.1} parent=11 // pred_check
          %p159 = pneg %p74
        $region14: #{tpu_custom_call.1} parent=11 // pred_check_branch
          %161 = sbr.rel (%p159) target = $region16
        $region15: #{tpu_custom_call.1} parent=11 // pred_region
          _
        $region16: #{tpu_custom_call.1} parent=11 // pred_fallthru
          _
        // Predicated region
        $region17: #{tpu_custom_call.1} parent=11 // pred_check
          %p162 = pneg %p95
        $region18: #{tpu_custom_call.1} parent=11 // pred_check_branch
          %164 = sbr.rel (%p162) target = $region20
        $region19: #{tpu_custom_call.1} parent=11 // pred_region
          _
        $region20: #{tpu_custom_call.1} parent=11 // pred_fallthru
          _
        // Predicated region
        $region21: #{tpu_custom_call.1} parent=11 // pred_check
          %p165 = pneg %p116
        $region22: #{tpu_custom_call.1} parent=11 // pred_check_branch
          %167 = sbr.rel (%p165) target = $region24
        $region23: #{tpu_custom_call.1} parent=11 // pred_region
          _
        $region24: #{tpu_custom_call.1} parent=11 // pred_fallthru
          _
      $region12: #{tpu_custom_call.1} parent=5 // pred_fallthru
        _
      %p168 = scmp.lt.s32.totalorder %s13, 2
      // Predicated region
      $region25: #{tpu_custom_call.1} parent=5 // pred_check
        %p169 = pneg %p168
      $region26: #{tpu_custom_call.1} parent=5 // pred_check_branch
        %171 = sbr.rel (%p169) target = $region28
      $region27: #{tpu_custom_call.1} parent=5 // pred_region
        // Predicated region
        $region29: #{tpu_custom_call.1} parent=27 // pred_check
          %p172 = pneg %p47
        $region30: #{tpu_custom_call.1} parent=27 // pred_check_branch
          %174 = sbr.rel (%p172) target = $region32
        $region31: #{tpu_custom_call.1} parent=27 // pred_region
          %s175 = smul.u32 32, %s21
          %p176 = scmp.lt.s32.totalorder %s20, 1
          %s177 = scalar_select %p176, %s20, 1
          %p178 = scmp.lt.s32.totalorder %s175, 31
          %s179 = scalar_select %p178, %s175, 31
          %s180 = smul.addr %s177, 32
          %s181 = sadd.s32 %s179, %s180
          %s182 = smul.addr %s181, 4
          %s183 = scalar_lea.vmem %s0, %s182
          %s184 = smul.u32 32, %s21
        $region32: #{tpu_custom_call.1} parent=27 // pred_fallthru
          _
      $region28: #{tpu_custom_call.1} parent=5 // pred_fallthru
        _
      %p185 = scmp.le.s32.totalorder 1, %s13
      %p186 = scmp.lt.s32.totalorder %s13, 3
      %p187 = pnand %p185, %p186
      %p188 = pneg %p187
      // Predicated region
      $region33: #{tpu_custom_call.1} parent=5 // pred_check
        _
      $region34: #{tpu_custom_call.1} parent=5 // pred_check_branch
        %190 = sbr.rel (%p187) target = $region36
      $region35: #{tpu_custom_call.1} parent=5 // pred_region
        %s191 = ssub.s32 %s13, 1
        %s192 = smul.u32 32, %s23
        %p193 = scmp.lt.s32.totalorder %s22, 1
        %s194 = scalar_select %p193, %s22, 1
        %p195 = scmp.lt.s32.totalorder %s192, 31
        %s196 = scalar_select %p195, %s192, 31
        %s197 = smul.addr %s194, 32
        %s198 = sadd.s32 %s196, %s197
        %s199 = smul.addr %s198, 4
        %s200 = scalar_lea.vmem %s0, %s199
        %p201 = pneg %p53
        %p202 = pneg %p50
        %p203 = pneg %p74
        %p204 = pneg %p71
        %p205 = pneg %p95
        %p206 = pneg %p92
        %p207 = pneg %p116
        %p208 = pneg %p113
        %p209 = pneg %p144
        %p210 = pneg %p141
        %s211 = sand.u32 %s131, 1
        %s212 = scalar_lea.sflag [#allocation4], %s211
        %s213 = sand.u32 %s131, 1
        %s214 = smul.addr %s213, 128
        %s215 = scalar_lea.vmem [#allocation3], %s214
        %s216 = smul.u32 32, %s23
        %p217 = scmp.lt.s32.totalorder %s22, 1
        %s218 = scalar_select %p217, %s22, 1
        %p219 = scmp.lt.s32.totalorder %s216, 31
        %s220 = scalar_select %p219, %s216, 31
        %s221 = smul.addr %s218, 32
        %s222 = sadd.s32 %s220, %s221
        %s223 = smul.addr %s222, 4
        %s224 = scalar_lea.vmem %s0, %s223
        %s225 = smul.u32 32, %s23
        %s226 = smul.u32 32, %s23
        %v228 = vld [vmem:[%s224] sm:$0xf]
        %v229 = vld [vmem:[%s224 + $0x4] sm:$0xf]
        %v230 = vld [vmem:[%s224 + $0x8] sm:$0xf]
        %v231 = vld [vmem:[%s224 + $0xc] sm:$0xf]
        %v232 = vld [vmem:[%s224 + $0x10] sm:$0xf]
        %v233 = vld [vmem:[%s224 + $0x14] sm:$0xf]
        %v234 = vld [vmem:[%s224 + $0x18] sm:$0xf]
        %v235 = vld [vmem:[%s224 + $0x1c] sm:$0xf]
        %v236 = vld [vmem:[%s224 + $0x20] sm:$0xf]
        %v237 = vld [vmem:[%s224 + $0x24] sm:$0xf]
        %v238 = vld [vmem:[%s224 + $0x28] sm:$0xf]
        %v239 = vld [vmem:[%s224 + $0x2c] sm:$0xf]
        %v240 = vld [vmem:[%s224 + $0x30] sm:$0xf]
        %v241 = vld [vmem:[%s224 + $0x34] sm:$0xf]
        %v242 = vld [vmem:[%s224 + $0x38] sm:$0xf]
        %v243 = vld [vmem:[%s224 + $0x3c] sm:$0xf]
        %v244 = vld [vmem:[%s224 + $0x40] sm:$0xf]
        %v245 = vld [vmem:[%s224 + $0x44] sm:$0xf]
        %v246 = vld [vmem:[%s224 + $0x48] sm:$0xf]
        %v247 = vld [vmem:[%s224 + $0x4c] sm:$0xf]
        %v248 = vld [vmem:[%s224 + $0x50] sm:$0xf]
        %v249 = vld [vmem:[%s224 + $0x54] sm:$0xf]
        %v250 = vld [vmem:[%s224 + $0x58] sm:$0xf]
        %v251 = vld [vmem:[%s224 + $0x5c] sm:$0xf]
        %v252 = vld [vmem:[%s224 + $0x60] sm:$0xf]
        %v253 = vld [vmem:[%s224 + $0x64] sm:$0xf]
        %v254 = vld [vmem:[%s224 + $0x68] sm:$0xf]
        %v255 = vld [vmem:[%s224 + $0x6c] sm:$0xf]
        %v256 = vld [vmem:[%s224 + $0x70] sm:$0xf]
        %v257 = vld [vmem:[%s224 + $0x74] sm:$0xf]
        %v258 = vld [vmem:[%s224 + $0x78] sm:$0xf]
        %v259 = vld [vmem:[%s224 + $0x7c] sm:$0xf]
        %v260 = vld [vmem:[%s1] sm:$0x3]
        %v293 = vunpack.c.l.b16 %v228
        %v294 = vunpack.c.l.b16 %v229
        %v295 = vunpack.c.l.b16 %v230
        %v296 = vunpack.c.l.b16 %v231
        %v297 = vunpack.c.l.b16 %v232
        %v298 = vunpack.c.l.b16 %v233
        %v299 = vunpack.c.l.b16 %v234
        %v300 = vunpack.c.l.b16 %v235
        %v301 = vunpack.c.l.b16 %v236
        %v302 = vunpack.c.l.b16 %v237
        %v303 = vunpack.c.l.b16 %v238
        %v304 = vunpack.c.l.b16 %v239
        %v305 = vunpack.c.l.b16 %v240
        %v306 = vunpack.c.l.b16 %v241
        %v307 = vunpack.c.l.b16 %v242
        %v308 = vunpack.c.l.b16 %v243
        %v309 = vunpack.c.l.b16 %v244
        %v310 = vunpack.c.l.b16 %v245
        %v311 = vunpack.c.l.b16 %v246
        %v312 = vunpack.c.l.b16 %v247
        %v313 = vunpack.c.l.b16 %v248
        %v314 = vunpack.c.l.b16 %v249
        %v315 = vunpack.c.l.b16 %v250
        %v316 = vunpack.c.l.b16 %v251
        %v317 = vunpack.c.l.b16 %v252
        %v318 = vunpack.c.l.b16 %v253
        %v319 = vunpack.c.l.b16 %v254
        %v320 = vunpack.c.l.b16 %v255
        %v321 = vunpack.c.l.b16 %v256
        %v322 = vunpack.c.l.b16 %v257
        %v323 = vunpack.c.l.b16 %v258
        %v324 = vunpack.c.l.b16 %v259
        %v325 = vpack.c.b16 %v294, %v293
        %v326 = vpack.c.b16 %v296, %v295
        %v327 = vpack.c.b16 %v298, %v297
        %v328 = vpack.c.b16 %v300, %v299
        %v329 = vpack.c.b16 %v302, %v301
        %v330 = vpack.c.b16 %v304, %v303
        %v331 = vpack.c.b16 %v306, %v305
        %v332 = vpack.c.b16 %v308, %v307
        %v333 = vpack.c.b16 %v310, %v309
        %v334 = vpack.c.b16 %v312, %v311
        %v335 = vpack.c.b16 %v314, %v313
        %v336 = vpack.c.b16 %v316, %v315
        %v337 = vpack.c.b16 %v318, %v317
        %v338 = vpack.c.b16 %v320, %v319
        %v339 = vpack.c.b16 %v322, %v321
        %v340 = vpack.c.b16 %v324, %v323
        %vm341 = vcmask 31744
        %v343 = vsel %vm341, %v325, 0
        %v346 = vsel %vm341, %v326, 0
        %v349 = vsel %vm341, %v327, 0
        %v352 = vsel %vm341, %v328, 0
        %v355 = vsel %vm341, %v329, 0
        %v358 = vsel %vm341, %v330, 0
        %v361 = vsel %vm341, %v331, 0
        %v364 = vsel %vm341, %v332, 0
        %v367 = vsel %vm341, %v333, 0
        %v370 = vsel %vm341, %v334, 0
        %v373 = vsel %vm341, %v335, 0
        %v376 = vsel %vm341, %v336, 0
        %v379 = vsel %vm341, %v337, 0
        %v382 = vsel %vm341, %v338, 0
        %v385 = vsel %vm341, %v339, 0
        %v388 = vsel %vm341, %v340, 0
        %vm390 = vcmask 1041408
        %v392 = vsel %vm390, %v260, 0
        %394 = vmatprep.subr.bf16.mxu0 0
        %395 = vmatpush1.bf16.msra.mxu0 %v392
        %396 = vmatprep.subr.bf16.mxu0 0
        %397 = vmatpush1.bf16.msra.mxu0 0
        %398 = vmatprep.subr.bf16.mxu0 0
        %399 = vmatpush1.bf16.msra.mxu0 0
        %400 = vmatprep.subr.bf16.mxu0 0
        %401 = vmatpush1.bf16.msra.mxu0 0
        %402 = vmatprep.subr.bf16.mxu0 0
        %403 = vmatpush1.bf16.msra.mxu0 0
        %404 = vmatprep.subr.bf16.mxu0 0
        %405 = vmatpush1.bf16.msra.mxu0 0
        %406 = vmatprep.subr.bf16.mxu0 0
        %407 = vmatpush1.bf16.msra.mxu0 0
        %408 = vmatprep.subr.bf16.mxu0 0
        %409 = vmatpush1.bf16.msra.mxu0 0
        %410 = vmatprep.subr.bf16.mxu0 0
        %411 = vmatpush1.bf16.msra.mxu0 0
        %412 = vmatprep.subr.bf16.mxu0 0
        %413 = vmatpush1.bf16.msra.mxu0 0
        %414 = vmatprep.subr.bf16.mxu0 0
        %415 = vmatpush1.bf16.msra.mxu0 0
        %416 = vmatprep.subr.bf16.mxu0 0
        %417 = vmatpush1.bf16.msra.mxu0 0
        %418 = vmatprep.subr.bf16.mxu0 0
        %419 = vmatpush1.bf16.msra.mxu0 0
        %420 = vmatprep.subr.bf16.mxu0 0
        %421 = vmatpush1.bf16.msra.mxu0 0
        %422 = vmatprep.subr.bf16.mxu0 0
        %423 = vmatpush1.bf16.msra.mxu0 0
        %424 = vmatprep.subr.bf16.mxu0 0
        %425 = vmatpush1.bf16.msra.mxu0 0
        %426 = vmatprep.mubr.bf16.mxu0 0
        %427 = vmatmul.mubr.bf16.gmra.mrb[0].mxu0 %v343
        %v428 = vpop.f32.mrb[0].mxu0
        %v429 = vadd.f32 0.0, %v428
        %v430 = vpop.f32.mrb[0].mxu0
        %v431 = vpop.f32.mrb[0].mxu0
        %v432 = vadd.f32 0.0, %v431
        %v433 = vpop.f32.mrb[0].mxu0
        %434 = vmatprep.mubr.bf16.mxu0 0
        %435 = vmatmul.mubr.bf16.gmra.mrb[0].mxu0 %v346
        %v436 = vpop.f32.mrb[0].mxu0
        %v437 = vadd.f32 0.0, %v436
        %v438 = vpop.f32.mrb[0].mxu0
        %v439 = vpop.f32.mrb[0].mxu0
        %v440 = vadd.f32 0.0, %v439
        %v441 = vpop.f32.mrb[0].mxu0
        %442 = vmatprep.mubr.bf16.mxu0 0
        %443 = vmatmul.mubr.bf16.gmra.mrb[0].mxu0 %v349
        %v444 = vpop.f32.mrb[0].mxu0
        %v445 = vadd.f32 0.0, %v444
        %v446 = vpop.f32.mrb[0].mxu0
        %v447 = vpop.f32.mrb[0].mxu0
        %v448 = vadd.f32 0.0, %v447
        %v449 = vpop.f32.mrb[0].mxu0
        %450 = vmatprep.mubr.bf16.mxu0 0
        %451 = vmatmul.mubr.bf16.gmra.mrb[0].mxu0 %v352
        %v452 = vpop.f32.mrb[0].mxu0
        %v453 = vadd.f32 0.0, %v452
        %v454 = vpop.f32.mrb[0].mxu0
        %v455 = vpop.f32.mrb[0].mxu0
        %v456 = vadd.f32 0.0, %v455
        %v457 = vpop.f32.mrb[0].mxu0
        %458 = vmatprep.mubr.bf16.mxu0 0
        %459 = vmatmul.mubr.bf16.gmra.mrb[0].mxu0 %v355
        %v460 = vpop.f32.mrb[0].mxu0
        %v461 = vadd.f32 0.0, %v460
        %v462 = vpop.f32.mrb[0].mxu0
        %v463 = vpop.f32.mrb[0].mxu0
        %v464 = vadd.f32 0.0, %v463
        %v465 = vpop.f32.mrb[0].mxu0
        %466 = vmatprep.mubr.bf16.mxu0 0
        %467 = vmatmul.mubr.bf16.gmra.mrb[0].mxu0 %v358
        %v468 = vpop.f32.mrb[0].mxu0
        %v469 = vadd.f32 0.0, %v468
        %v470 = vpop.f32.mrb[0].mxu0
        %v471 = vpop.f32.mrb[0].mxu0
        %v472 = vadd.f32 0.0, %v471
        %v473 = vpop.f32.mrb[0].mxu0
        %474 = vmatprep.mubr.bf16.mxu0 0
        %475 = vmatmul.mubr.bf16.gmra.mrb[0].mxu0 %v361
        %v476 = vpop.f32.mrb[0].mxu0
        %v477 = vadd.f32 0.0, %v476
        %v478 = vpop.f32.mrb[0].mxu0
        %v479 = vpop.f32.mrb[0].mxu0
        %v480 = vadd.f32 0.0, %v479
        %v481 = vpop.f32.mrb[0].mxu0
        %482 = vmatprep.mubr.bf16.mxu0 0
        %483 = vmatmul.mubr.bf16.gmra.mrb[0].mxu0 %v364
        %v484 = vpop.f32.mrb[0].mxu0
        %v485 = vadd.f32 0.0, %v484
        %v486 = vpop.f32.mrb[0].mxu0
        %v487 = vpop.f32.mrb[0].mxu0
        %v488 = vadd.f32 0.0, %v487
        %v489 = vpop.f32.mrb[0].mxu0
        %490 = vmatprep.mubr.bf16.mxu0 0
        %491 = vmatmul.mubr.bf16.gmra.mrb[0].mxu0 %v367
        %v492 = vpop.f32.mrb[0].mxu0
        %v493 = vadd.f32 0.0, %v492
        %v494 = vpop.f32.mrb[0].mxu0
        %v495 = vpop.f32.mrb[0].mxu0
        %v496 = vadd.f32 0.0, %v495
        %v497 = vpop.f32.mrb[0].mxu0
        %498 = vmatprep.mubr.bf16.mxu0 0
        %499 = vmatmul.mubr.bf16.gmra.mrb[0].mxu0 %v370
        %v500 = vpop.f32.mrb[0].mxu0
        %v501 = vadd.f32 0.0, %v500
        %v502 = vpop.f32.mrb[0].mxu0
        %v503 = vpop.f32.mrb[0].mxu0
        %v504 = vadd.f32 0.0, %v503
        %v505 = vpop.f32.mrb[0].mxu0
        %506 = vmatprep.mubr.bf16.mxu0 0
        %507 = vmatmul.mubr.bf16.gmra.mrb[0].mxu0 %v373
        %v508 = vpop.f32.mrb[0].mxu0
        %v509 = vadd.f32 0.0, %v508
        %v510 = vpop.f32.mrb[0].mxu0
        %v511 = vpop.f32.mrb[0].mxu0
        %v512 = vadd.f32 0.0, %v511
        %v513 = vpop.f32.mrb[0].mxu0
        %514 = vmatprep.mubr.bf16.mxu0 0
        %515 = vmatmul.mubr.bf16.gmra.mrb[0].mxu0 %v376
        %v516 = vpop.f32.mrb[0].mxu0
        %v517 = vadd.f32 0.0, %v516
        %v518 = vpop.f32.mrb[0].mxu0
        %v519 = vpop.f32.mrb[0].mxu0
        %v520 = vadd.f32 0.0, %v519
        %v521 = vpop.f32.mrb[0].mxu0
        %522 = vmatprep.mubr.bf16.mxu0 0
        %523 = vmatmul.mubr.bf16.gmra.mrb[0].mxu0 %v379
        %v524 = vpop.f32.mrb[0].mxu0
        %v525 = vadd.f32 0.0, %v524
        %v526 = vpop.f32.mrb[0].mxu0
        %v527 = vpop.f32.mrb[0].mxu0
        %v528 = vadd.f32 0.0, %v527
        %v529 = vpop.f32.mrb[0].mxu0
        %530 = vmatprep.mubr.bf16.mxu0 0
        %531 = vmatmul.mubr.bf16.gmra.mrb[0].mxu0 %v382
        %v532 = vpop.f32.mrb[0].mxu0
        %v533 = vadd.f32 0.0, %v532
        %v534 = vpop.f32.mrb[0].mxu0
        %v535 = vpop.f32.mrb[0].mxu0
        %v536 = vadd.f32 0.0, %v535
        %v537 = vpop.f32.mrb[0].mxu0
        %538 = vmatprep.mubr.bf16.mxu0 0
        %539 = vmatmul.mubr.bf16.gmra.mrb[0].mxu0 %v385
        %v540 = vpop.f32.mrb[0].mxu0
        %v541 = vadd.f32 0.0, %v540
        %v542 = vpop.f32.mrb[0].mxu0
        %v543 = vpop.f32.mrb[0].mxu0
        %v544 = vadd.f32 0.0, %v543
        %v545 = vpop.f32.mrb[0].mxu0
        %546 = vmatprep.mubr.bf16.mxu0 0
        %547 = vmatmul.mubr.bf16.gmra.mrb[0].mxu0 %v388
        %v548 = vpop.f32.mrb[0].mxu0
        %v549 = vadd.f32 0.0, %v548
        %v550 = vpop.f32.mrb[0].mxu0
        %v551 = vpop.f32.mrb[0].mxu0
        %v552 = vadd.f32 0.0, %v551
        %v553 = vpop.f32.mrb[0].mxu0
        %554 = vdwg.mxu0
        %555 = vst [vmem:[#allocation2] sm:$0xff] %v429
        %556 = vst [vmem:[#allocation2 + $0x8] sm:$0xff] %v432
        %557 = vst [vmem:[#allocation2 + $0x10] sm:$0xff] %v437
        %558 = vst [vmem:[#allocation2 + $0x18] sm:$0xff] %v440
        %559 = vst [vmem:[#allocation2 + $0x20] sm:$0xff] %v445
        %560 = vst [vmem:[#allocation2 + $0x28] sm:$0xff] %v448
        %561 = vst [vmem:[#allocation2 + $0x30] sm:$0xff] %v453
        %562 = vst [vmem:[#allocation2 + $0x38] sm:$0xff] %v456
        %563 = vst [vmem:[#allocation2 + $0x40] sm:$0xff] %v461
        %564 = vst [vmem:[#allocation2 + $0x48] sm:$0xff] %v464
        %565 = vst [vmem:[#allocation2 + $0x50] sm:$0xff] %v469
        %566 = vst [vmem:[#allocation2 + $0x58] sm:$0xff] %v472
        %567 = vst [vmem:[#allocation2 + $0x60] sm:$0xff] %v477
        %568 = vst [vmem:[#allocation2 + $0x68] sm:$0xff] %v480
        %569 = vst [vmem:[#allocation2 + $0x70] sm:$0xff] %v485
        %570 = vst [vmem:[#allocation2 + $0x78] sm:$0xff] %v488
        %571 = vst [vmem:[#allocation2 + $0x80] sm:$0xff] %v493
        %572 = vst [vmem:[#allocation2 + $0x88] sm:$0xff] %v496
        %573 = vst [vmem:[#allocation2 + $0x90] sm:$0xff] %v501
        %574 = vst [vmem:[#allocation2 + $0x98] sm:$0xff] %v504
        %575 = vst [vmem:[#allocation2 + $0xa0] sm:$0xff] %v509
        %576 = vst [vmem:[#allocation2 + $0xa8] sm:$0xff] %v512
        %577 = vst [vmem:[#allocation2 + $0xb0] sm:$0xff] %v517
        %578 = vst [vmem:[#allocation2 + $0xb8] sm:$0xff] %v520
        %579 = vst [vmem:[#allocation2 + $0xc0] sm:$0xff] %v525
        %580 = vst [vmem:[#allocation2 + $0xc8] sm:$0xff] %v528
        %581 = vst [vmem:[#allocation2 + $0xd0] sm:$0xff] %v533
        %582 = vst [vmem:[#allocation2 + $0xd8] sm:$0xff] %v536
        %583 = vst [vmem:[#allocation2 + $0xe0] sm:$0xff] %v541
        %584 = vst [vmem:[#allocation2 + $0xe8] sm:$0xff] %v544
        %585 = vst [vmem:[#allocation2 + $0xf0] sm:$0xff] %v549
        %586 = vst [vmem:[#allocation2 + $0xf8] sm:$0xff] %v552
        %v587 = vld [vmem:[#allocation2] sm:$0xff]
        %v588 = vld [vmem:[#allocation2 + $0x8] sm:$0xff]
        %v589 = vld [vmem:[#allocation2 + $0x10] sm:$0xff]
        %v590 = vld [vmem:[#allocation2 + $0x18] sm:$0xff]
        %v591 = vld [vmem:[#allocation2 + $0x20] sm:$0xff]
        %v592 = vld [vmem:[#allocation2 + $0x28] sm:$0xff]
        %v593 = vld [vmem:[#allocation2 + $0x30] sm:$0xff]
        %v594 = vld [vmem:[#allocation2 + $0x38] sm:$0xff]
        %v595 = vld [vmem:[#allocation2 + $0x40] sm:$0xff]
        %v596 = vld [vmem:[#allocation2 + $0x48] sm:$0xff]
        %v597 = vld [vmem:[#allocation2 + $0x50] sm:$0xff]
        %v598 = vld [vmem:[#allocation2 + $0x58] sm:$0xff]
        %v599 = vld [vmem:[#allocation2 + $0x60] sm:$0xff]
        %v600 = vld [vmem:[#allocation2 + $0x68] sm:$0xff]
        %v601 = vld [vmem:[#allocation2 + $0x70] sm:$0xff]
        %v602 = vld [vmem:[#allocation2 + $0x78] sm:$0xff]
        %v603 = vld [vmem:[#allocation2 + $0x80] sm:$0xff]
        %v604 = vld [vmem:[#allocation2 + $0x88] sm:$0xff]
        %v605 = vld [vmem:[#allocation2 + $0x90] sm:$0xff]
        %v606 = vld [vmem:[#allocation2 + $0x98] sm:$0xff]
        %v607 = vld [vmem:[#allocation2 + $0xa0] sm:$0xff]
        %v608 = vld [vmem:[#allocation2 + $0xa8] sm:$0xff]
        %v609 = vld [vmem:[#allocation2 + $0xb0] sm:$0xff]
        %v610 = vld [vmem:[#allocation2 + $0xb8] sm:$0xff]
        %v611 = vld [vmem:[#allocation2 + $0xc0] sm:$0xff]
        %v612 = vld [vmem:[#allocation2 + $0xc8] sm:$0xff]
        %v613 = vld [vmem:[#allocation2 + $0xd0] sm:$0xff]
        %v614 = vld [vmem:[#allocation2 + $0xd8] sm:$0xff]
        %v615 = vld [vmem:[#allocation2 + $0xe0] sm:$0xff]
        %v616 = vld [vmem:[#allocation2 + $0xe8] sm:$0xff]
        %v617 = vld [vmem:[#allocation2 + $0xf0] sm:$0xff]
        %v618 = vld [vmem:[#allocation2 + $0xf8] sm:$0xff]
        %v619 = vld [vmem:[%s2] sm:$0x1]
        %v621 = vlaneseq
        %v622 = vshrl.u32 %v621, 7
        %v623 = vsub.s32 0, %v622
        %v624 = vrot.slane %v619, %v623
        %v626 = vmul.f32 %v587, %v624
        %v627 = vmul.f32 %v588, %v624
        %v628 = vmul.f32 %v589, %v624
        %v629 = vmul.f32 %v590, %v624
        %v630 = vmul.f32 %v591, %v624
        %v631 = vmul.f32 %v592, %v624
        %v632 = vmul.f32 %v593, %v624
        %v633 = vmul.f32 %v594, %v624
        %v634 = vmul.f32 %v595, %v624
        %v635 = vmul.f32 %v596, %v624
        %v636 = vmul.f32 %v597, %v624
        %v637 = vmul.f32 %v598, %v624
        %v638 = vmul.f32 %v599, %v624
        %v639 = vmul.f32 %v600, %v624
        %v640 = vmul.f32 %v601, %v624
        %v641 = vmul.f32 %v602, %v624
        %v642 = vmul.f32 %v603, %v624
        %v643 = vmul.f32 %v604, %v624
        %v644 = vmul.f32 %v605, %v624
        %v645 = vmul.f32 %v606, %v624
        %v646 = vmul.f32 %v607, %v624
        %v647 = vmul.f32 %v608, %v624
        %v648 = vmul.f32 %v609, %v624
        %v649 = vmul.f32 %v610, %v624
        %v650 = vmul.f32 %v611, %v624
        %v651 = vmul.f32 %v612, %v624
        %v652 = vmul.f32 %v613, %v624
        %v653 = vmul.f32 %v614, %v624
        %v654 = vmul.f32 %v615, %v624
        %v655 = vmul.f32 %v616, %v624
        %v656 = vmul.f32 %v617, %v624
        %v657 = vmul.f32 %v618, %v624
        %v658 = vld [vmem:[%s3] sm:$0x1]
        %v660 = vlaneseq
        %v661 = vshrl.u32 %v660, 7
        %v662 = vsub.s32 0, %v661
        %v663 = vrot.slane %v658, %v662
        %v665 = vadd.f32 %v626, %v663
        %v666 = vadd.f32 %v627, %v663
        %v667 = vadd.f32 %v628, %v663
        %v668 = vadd.f32 %v629, %v663
        %v669 = vadd.f32 %v630, %v663
        %v670 = vadd.f32 %v631, %v663
        %v671 = vadd.f32 %v632, %v663
        %v672 = vadd.f32 %v633, %v663
        %v673 = vadd.f32 %v634, %v663
        %v674 = vadd.f32 %v635, %v663
        %v675 = vadd.f32 %v636, %v663
        %v676 = vadd.f32 %v637, %v663
        %v677 = vadd.f32 %v638, %v663
        %v678 = vadd.f32 %v639, %v663
        %v679 = vadd.f32 %v640, %v663
        %v680 = vadd.f32 %v641, %v663
        %v681 = vadd.f32 %v642, %v663
        %v682 = vadd.f32 %v643, %v663
        %v683 = vadd.f32 %v644, %v663
        %v684 = vadd.f32 %v645, %v663
        %v685 = vadd.f32 %v646, %v663
        %v686 = vadd.f32 %v647, %v663
        %v687 = vadd.f32 %v648, %v663
        %v688 = vadd.f32 %v649, %v663
        %v689 = vadd.f32 %v650, %v663
        %v690 = vadd.f32 %v651, %v663
        %v691 = vadd.f32 %v652, %v663
        %v692 = vadd.f32 %v653, %v663
        %v693 = vadd.f32 %v654, %v663
        %v694 = vadd.f32 %v655, %v663
        %v695 = vadd.f32 %v656, %v663
        %v696 = vadd.f32 %v657, %v663
        %v697 = vmax.f32 %v665, 0.0
        %v698 = vmax.f32 %v666, 0.0
        %v699 = vmax.f32 %v667, 0.0
        %v700 = vmax.f32 %v668, 0.0
        %v701 = vmax.f32 %v669, 0.0
        %v702 = vmax.f32 %v670, 0.0
        %v703 = vmax.f32 %v671, 0.0
        %v704 = vmax.f32 %v672, 0.0
        %v705 = vmax.f32 %v673, 0.0
        %v706 = vmax.f32 %v674, 0.0
        %v707 = vmax.f32 %v675, 0.0
        %v708 = vmax.f32 %v676, 0.0
        %v709 = vmax.f32 %v677, 0.0
        %v710 = vmax.f32 %v678, 0.0
        %v711 = vmax.f32 %v679, 0.0
        %v712 = vmax.f32 %v680, 0.0
        %v713 = vmax.f32 %v681, 0.0
        %v714 = vmax.f32 %v682, 0.0
        %v715 = vmax.f32 %v683, 0.0
        %v716 = vmax.f32 %v684, 0.0
        %v717 = vmax.f32 %v685, 0.0
        %v718 = vmax.f32 %v686, 0.0
        %v719 = vmax.f32 %v687, 0.0
        %v720 = vmax.f32 %v688, 0.0
        %v721 = vmax.f32 %v689, 0.0
        %v722 = vmax.f32 %v690, 0.0
        %v723 = vmax.f32 %v691, 0.0
        %v724 = vmax.f32 %v692, 0.0
        %v725 = vmax.f32 %v693, 0.0
        %v726 = vmax.f32 %v694, 0.0
        %v727 = vmax.f32 %v695, 0.0
        %v728 = vmax.f32 %v696, 0.0
        %v729 = vpack.c.bf16 %v698, %v697
        %v730 = vpack.c.bf16 %v700, %v699
        %v731 = vpack.c.bf16 %v702, %v701
        %v732 = vpack.c.bf16 %v704, %v703
        %v733 = vpack.c.bf16 %v706, %v705
        %v734 = vpack.c.bf16 %v708, %v707
        %v735 = vpack.c.bf16 %v710, %v709
        %v736 = vpack.c.bf16 %v712, %v711
        %v737 = vpack.c.bf16 %v714, %v713
        %v738 = vpack.c.bf16 %v716, %v715
        %v739 = vpack.c.bf16 %v718, %v717
        %v740 = vpack.c.bf16 %v720, %v719
        %v741 = vpack.c.bf16 %v722, %v721
        %v742 = vpack.c.bf16 %v724, %v723
        %v743 = vpack.c.bf16 %v726, %v725
        %v744 = vpack.c.bf16 %v728, %v727
        %v761 = vunpack.c.l.b16 %v729
        %v762 = vunpack.c.h.b16 %v729
        %v763 = vunpack.c.l.b16 %v730
        %v764 = vunpack.c.h.b16 %v730
        %v765 = vunpack.c.l.b16 %v731
        %v766 = vunpack.c.h.b16 %v731
        %v767 = vunpack.c.l.b16 %v732
        %v768 = vunpack.c.h.b16 %v732
        %v769 = vunpack.c.l.b16 %v733
        %v770 = vunpack.c.h.b16 %v733
        %v771 = vunpack.c.l.b16 %v734
        %v772 = vunpack.c.h.b16 %v734
        %v773 = vunpack.c.l.b16 %v735
        %v774 = vunpack.c.h.b16 %v735
        %v775 = vunpack.c.l.b16 %v736
        %v776 = vunpack.c.h.b16 %v736
        %v777 = vunpack.c.l.b16 %v737
        %v778 = vunpack.c.h.b16 %v737
        %v779 = vunpack.c.l.b16 %v738
        %v780 = vunpack.c.h.b16 %v738
        %v781 = vunpack.c.l.b16 %v739
        %v782 = vunpack.c.h.b16 %v739
        %v783 = vunpack.c.l.b16 %v740
        %v784 = vunpack.c.h.b16 %v740
        %v785 = vunpack.c.l.b16 %v741
        %v786 = vunpack.c.h.b16 %v741
        %v787 = vunpack.c.l.b16 %v742
        %v788 = vunpack.c.h.b16 %v742
        %v789 = vunpack.c.l.b16 %v743
        %v790 = vunpack.c.h.b16 %v743
        %v791 = vunpack.c.l.b16 %v744
        %v792 = vunpack.c.h.b16 %v744
        %v793 = vpack.c.b16 %v761, %v761
        %v794 = vpack.c.b16 %v762, %v762
        %v795 = vpack.c.b16 %v763, %v763
        %v796 = vpack.c.b16 %v764, %v764
        %v797 = vpack.c.b16 %v765, %v765
        %v798 = vpack.c.b16 %v766, %v766
        %v799 = vpack.c.b16 %v767, %v767
        %v800 = vpack.c.b16 %v768, %v768
        %v801 = vpack.c.b16 %v769, %v769
        %v802 = vpack.c.b16 %v770, %v770
        %v803 = vpack.c.b16 %v771, %v771
        %v804 = vpack.c.b16 %v772, %v772
        %v805 = vpack.c.b16 %v773, %v773
        %v806 = vpack.c.b16 %v774, %v774
        %v807 = vpack.c.b16 %v775, %v775
        %v808 = vpack.c.b16 %v776, %v776
        %v809 = vpack.c.b16 %v777, %v777
        %v810 = vpack.c.b16 %v778, %v778
        %v811 = vpack.c.b16 %v779, %v779
        %v812 = vpack.c.b16 %v780, %v780
        %v813 = vpack.c.b16 %v781, %v781
        %v814 = vpack.c.b16 %v782, %v782
        %v815 = vpack.c.b16 %v783, %v783
        %v816 = vpack.c.b16 %v784, %v784
        %v817 = vpack.c.b16 %v785, %v785
        %v818 = vpack.c.b16 %v786, %v786
        %v819 = vpack.c.b16 %v787, %v787
        %v820 = vpack.c.b16 %v788, %v788
        %v821 = vpack.c.b16 %v789, %v789
        %v822 = vpack.c.b16 %v790, %v790
        %v823 = vpack.c.b16 %v791, %v791
        %v824 = vpack.c.b16 %v792, %v792
        %857 = vst [vmem:[%s215] sm:$0xf] %v793
        %858 = vst [vmem:[%s215 + $0x4] sm:$0xf] %v794
        %859 = vst [vmem:[%s215 + $0x8] sm:$0xf] %v795
        %860 = vst [vmem:[%s215 + $0xc] sm:$0xf] %v796
        %861 = vst [vmem:[%s215 + $0x10] sm:$0xf] %v797
        %862 = vst [vmem:[%s215 + $0x14] sm:$0xf] %v798
        %863 = vst [vmem:[%s215 + $0x18] sm:$0xf] %v799
        %864 = vst [vmem:[%s215 + $0x1c] sm:$0xf] %v800
        %865 = vst [vmem:[%s215 + $0x20] sm:$0xf] %v801
        %866 = vst [vmem:[%s215 + $0x24] sm:$0xf] %v802
        %867 = vst [vmem:[%s215 + $0x28] sm:$0xf] %v803
        %868 = vst [vmem:[%s215 + $0x2c] sm:$0xf] %v804
        %869 = vst [vmem:[%s215 + $0x30] sm:$0xf] %v805
        %870 = vst [vmem:[%s215 + $0x34] sm:$0xf] %v806
        %871 = vst [vmem:[%s215 + $0x38] sm:$0xf] %v807
        %872 = vst [vmem:[%s215 + $0x3c] sm:$0xf] %v808
        %873 = vst [vmem:[%s215 + $0x40] sm:$0xf] %v809
        %874 = vst [vmem:[%s215 + $0x44] sm:$0xf] %v810
        %875 = vst [vmem:[%s215 + $0x48] sm:$0xf] %v811
        %876 = vst [vmem:[%s215 + $0x4c] sm:$0xf] %v812
        %877 = vst [vmem:[%s215 + $0x50] sm:$0xf] %v813
        %878 = vst [vmem:[%s215 + $0x54] sm:$0xf] %v814
        %879 = vst [vmem:[%s215 + $0x58] sm:$0xf] %v815
        %880 = vst [vmem:[%s215 + $0x5c] sm:$0xf] %v816
        %881 = vst [vmem:[%s215 + $0x60] sm:$0xf] %v817
        %882 = vst [vmem:[%s215 + $0x64] sm:$0xf] %v818
        %883 = vst [vmem:[%s215 + $0x68] sm:$0xf] %v819
        %884 = vst [vmem:[%s215 + $0x6c] sm:$0xf] %v820
        %885 = vst [vmem:[%s215 + $0x70] sm:$0xf] %v821
        %886 = vst [vmem:[%s215 + $0x74] sm:$0xf] %v822
        %887 = vst [vmem:[%s215 + $0x78] sm:$0xf] %v823
        %888 = vst [vmem:[%s215 + $0x7c] sm:$0xf] %v824
        %s889 = sand.u32 %s131, 1
        %s890 = scalar_lea.sflag [#allocation4], %s889
        %s891 = sand.u32 %s131, 1
        %s892 = smul.addr %s891, 128
        %s893 = scalar_lea.vmem [#allocation3], %s892
        // Predicated region
        $region37: #{tpu_custom_call.1} parent=35 // pred_check
          %p894 = pneg %p141
        $region38: #{tpu_custom_call.1} parent=35 // pred_check_branch
          %896 = sbr.rel (%p894) target = $region40
        $region39: #{tpu_custom_call.1} parent=35 // pred_region
          %s897 = smul.u32 32, %s23
          %s899 = ssub.s32 2048, 2048
          %900 = vsyncadd %s890, %s899
          %s901 = smul.addr %s22, 32
          %s902 = sadd.s32 %s897, %s901
          %s903 = smul.addr %s902, 64
          %s904 = scalar_lea.hbm %s4, %s903
          %s905 = sshll.u32 %s893, 4
          %s906 = int_to_ptr.vmem [resolvable:$true] %s905
          %911 = dma.vmem_to_hbm [thread:$0]  %s906, 2048, %s904, %s890, 64, 64, 4
        $region40: #{tpu_custom_call.1} parent=35 // pred_fallthru
          _
      $region36: #{tpu_custom_call.1} parent=5 // pred_fallthru
        _
      %p912 = scmp.le.s32.totalorder 2, %s13
      // Predicated region
      $region41: #{tpu_custom_call.1} parent=5 // pred_check
        %p913 = pneg %p912
      $region42: #{tpu_custom_call.1} parent=5 // pred_check_branch
        %915 = sbr.rel (%p913) target = $region44
      $region43: #{tpu_custom_call.1} parent=5 // pred_region
        %s916 = ssub.s32 %s13, 2
        // Predicated region
        $region45: #{tpu_custom_call.1} parent=43 // pred_check
          %p917 = pneg %p147
        $region46: #{tpu_custom_call.1} parent=43 // pred_check_branch
          %919 = sbr.rel (%p917) target = $region48
        $region47: #{tpu_custom_call.1} parent=43 // pred_region
          %s920 = sand.u32 %s132, 1
          %s921 = scalar_lea.sflag [#allocation4], %s920
          %s922 = sand.u32 %s132, 1
          %s923 = smul.addr %s922, 128
          %s924 = scalar_lea.vmem [#allocation3], %s923
          %925 = dma.done %s921, 2048
        $region48: #{tpu_custom_call.1} parent=43 // pred_fallthru
          _
      $region44: #{tpu_custom_call.1} parent=5 // pred_fallthru
        _
    $region6: #{tpu_custom_call.1} parent=1 // loop_footer
      %s17 = sadd.s32 1, %s13
    $region7: #{tpu_custom_call.1} parent=1 // loop_footer_branch
      %12 = sbr.rel target = $region3
    $region8: #{tpu_custom_call.1} parent=1 // loop_exit
      _
    %926 = vsyncpa [#allocation4], 1
    %s927 = scalar_lea.sflag [#allocation4], 1
    %928 = vsyncpa %s927, 1

</llo_original>
